<compile_context>
chip_gen: v5e
topology: v5e:2x2
jax: 0.10.0
libtpu: 0.0.40
codegen_flags: <defaults>
</compile_context>

<pallas_src>
import jax
import jax.numpy as jnp
from jax import lax
from jax.experimental import pallas as pl
from jax.experimental.pallas import tpu as pltpu

# Default tile sizes (tune per generation: v6e can go bigger, v5e prefers tn=128).
TM = 256
TN = 256
TK = 512


def _round_up(x, m):
    return ((x + m - 1) // m) * m


def _linear_kernel(x_ref, w_ref, b_ref, o_ref, acc_ref):
    """One (tm, tn) output tile, accumulated over the K grid axis.

    x_ref: (tm, tk)   activations
    w_ref: (tn, tk)   weight in native nn.Linear (Out, In) layout
    b_ref: (1, tn)    bias
    o_ref: (tm, tn)   output tile (written only on the last K step)
    acc_ref: (tm, tn) f32 accumulator scratch (resident across K)
    """
    k = pl.program_id(2)

    @pl.when(k == 0)
    def _init():
        acc_ref[...] = jnp.zeros_like(acc_ref)

    # NT matmul on the MXU: contract the last dim of x with the last dim of w
    # (i.e. x @ W^T) without any transpose materialization.
    acc_ref[...] += lax.dot_general(
        x_ref[...],
        w_ref[...],
        dimension_numbers=(((1,), (1,)), ((), ())),
        preferred_element_type=jnp.float32,
    )

    @pl.when(k == pl.num_programs(2) - 1)
    def _epilogue():
        out = acc_ref[...] + b_ref[...].astype(jnp.float32)
        o_ref[...] = out.astype(o_ref.dtype)


def prepare_params(weight, bias, *, tn=TN, tk=TK):
    """One-time parameter prep: zero-pad to lane-dense tile multiples.

    weight: (output_dim, input_dim)  -- PyTorch nn.Linear convention (kept as-is,
                                        no transpose).
    bias:   (output_dim,)
    Returns (weight_padded (N_p, K_p), bias_padded (1, N_p)).
    """
    assert tn % 128 == 0 and tk % 128 == 0
    out_dim, in_dim = weight.shape
    n_p = _round_up(out_dim, tn)
    k_p = _round_up(in_dim, tk)
    w_p = jnp.pad(weight, ((0, n_p - out_dim), (0, k_p - in_dim)))
    b_p = jnp.pad(bias, (0, n_p - out_dim)).reshape(1, n_p)
    return w_p, b_p


def softmax_regression_forward(x, weight_p, bias_p, output_dim, *, tm=TM, tn=TN, tk=TK):
    """Forward pass: logits = x @ W^T + b.

    x:        (batch, input_dim)
    weight_p: (N_p, K_p)  padded weight from prepare_params (native (Out, In) layout)
    bias_p:   (1, N_p)    padded bias from prepare_params
    returns   (batch, output_dim)
    """
    batch, input_dim = x.shape
    n_p, k_p = weight_p.shape
    assert k_p >= input_dim and n_p >= output_dim
    assert n_p % 128 == 0 and k_p % 128 == 0

    # Clamp tiles to the (padded) problem size; fall back to 128 if they do
    # not divide the padded dims. tm only needs sublane (8) alignment.
    tm = min(tm, _round_up(batch, 8))
    tn = min(tn, n_p)
    tk = min(tk, k_p)
    if n_p % tn:
        tn = 128
    if k_p % tk:
        tk = 128
    m_p = _round_up(batch, tm)

    # Pad activations: batch up to a tile multiple, K up to the weight's
    # padded K (zero rows/cols contribute nothing to the matmul).
    x_p = x
    if (m_p, k_p) != (batch, input_dim):
        x_p = jnp.pad(x, ((0, m_p - batch), (0, k_p - input_dim)))

    grid = (m_p // tm, n_p // tn, k_p // tk)

    elem = jnp.dtype(x.dtype).itemsize
    cost = pl.CostEstimate(
        flops=2 * m_p * k_p * n_p,
        transcendentals=0,
        bytes_accessed=(m_p * k_p + n_p * k_p + n_p + m_p * n_p) * elem,
    )

    out_p = pl.pallas_call(
        _linear_kernel,
        out_shape=jax.ShapeDtypeStruct((m_p, n_p), x.dtype),
        grid_spec=pltpu.PrefetchScalarGridSpec(
            num_scalar_prefetch=0,
            grid=grid,
            in_specs=[
                pl.BlockSpec((tm, tk), lambda i, j, k: (i, k)),   # x tile
                pl.BlockSpec((tn, tk), lambda i, j, k: (j, k)),   # weight tile (Out, In)
                pl.BlockSpec((1, tn), lambda i, j, k: (0, j)),    # bias tile
            ],
            out_specs=pl.BlockSpec((tm, tn), lambda i, j, k: (i, j)),
            scratch_shapes=[pltpu.VMEM((tm, tn), jnp.float32)],
        ),
        compiler_params=pltpu.CompilerParams(
            dimension_semantics=("parallel", "parallel", "arbitrary"),
        ),
        cost_estimate=cost,
    )(x_p, weight_p, bias_p)

    # Slice off batch / output padding (must happen before any downstream
    # softmax so the zero-logit pad columns don't leak probability mass).
    return out_p[:batch, :output_dim]


if __name__ == "__main__":
    # Small shapes consistent with the module's forward: x is (batch, input_dim).
    batch, input_dim, output_dim = 8, 32, 16

    key = jax.random.PRNGKey(0)
    kx, kw, kb = jax.random.split(key, 3)

    x = jax.random.normal(kx, (batch, input_dim), dtype=jnp.float32)
    # Synthetic parameters with nn.Linear(input_dim, output_dim) shapes.
    weight = jax.random.normal(kw, (output_dim, input_dim), dtype=jnp.float32) * 0.1
    bias = jax.random.normal(kb, (output_dim,), dtype=jnp.float32) * 0.1

    # One-time parameter prep (padding, no transpose).
    weight_p, bias_p = prepare_params(weight, bias)

    out = softmax_regression_forward(x, weight_p, bias_p, output_dim)
    out = jax.block_until_ready(out)

    # Reference check in plain JAX (module forward returns logits only).
    ref = x @ weight.T + bias
    assert out.shape == (batch, output_dim)
    assert jnp.allclose(out, ref, atol=1e-5, rtol=1e-5)

    print("KERNEL_OK")
</pallas_src>

<mosaic_0001>
module attributes {stable_mosaic.version = 11 : i64} {
  func.func @_linear_kernel(%arg0: i32, %arg1: i32, %arg2: i32, %arg3: memref<8x512xf32, #tpu.memory_space<vmem>>, %arg4: memref<256x512xf32, #tpu.memory_space<vmem>>, %arg5: memref<1x256xf32, #tpu.memory_space<vmem>>, %arg6: memref<8x256xf32, #tpu.memory_space<vmem>>, %arg7: memref<8x256xf32, #tpu.memory_space<vmem>>) attributes {dimension_semantics = [#tpu.dimension_semantics<parallel>, #tpu.dimension_semantics<parallel>, #tpu.dimension_semantics<arbitrary>], iteration_bounds = array<i64: 1, 1, 1>, scalar_prefetch = 0 : i64, scratch_operands = 1 : i64, tpu.core_type = #tpu.core_type<tc>, window_params = [{transform_indices = @transform_0, window_bounds = array<i64: 8, 512>}, {transform_indices = @transform_1, window_bounds = array<i64: 256, 512>}, {transform_indices = @transform_2, window_bounds = array<i64: 1, 256>}, {transform_indices = @transform_3, window_bounds = array<i64: 8, 256>}]} {
    %c0_i32 = arith.constant 0 : i32
    %0 = arith.cmpi eq, %arg2, %c0_i32 : i32
    %1 = arith.extui %0 : i1 to i32
    %c0_i32_0 = arith.constant 0 : i32
    %2 = arith.cmpi ne, %1, %c0_i32_0 : i32
    scf.if %2 {
      %cst_10 = arith.constant 0.000000e+00 : f32
      %12 = vector.broadcast %cst_10 : f32 to vector<8x256xf32>
      %c0_11 = arith.constant 0 : index
      %c0_12 = arith.constant 0 : index
      %13 = vector.load %arg7[%c0_11, %c0_12] : memref<8x256xf32, #tpu.memory_space<vmem>>, vector<8x256xf32>
      tpu.vector_store %arg7[%c0_11, %c0_12], %12 {strides = array<i32>} : memref<8x256xf32, #tpu.memory_space<vmem>>, vector<8x256xf32>,
    } else {
    }
    %c0 = arith.constant 0 : index
    %c0_1 = arith.constant 0 : index
    %3 = vector.load %arg7[%c0, %c0_1] : memref<8x256xf32, #tpu.memory_space<vmem>>, vector<8x256xf32>
    %c0_2 = arith.constant 0 : index
    %c0_3 = arith.constant 0 : index
    %4 = vector.load %arg3[%c0_2, %c0_3] : memref<8x512xf32, #tpu.memory_space<vmem>>, vector<8x512xf32>
    %c0_4 = arith.constant 0 : index
    %c0_5 = arith.constant 0 : index
    %5 = vector.load %arg4[%c0_4, %c0_5] : memref<256x512xf32, #tpu.memory_space<vmem>>, vector<256x512xf32>
    %cst = arith.constant dense<0.000000e+00> : vector<8x256xf32>
    %6 = tpu.matmul %4, %5, %cst {dimension_numbers = #tpu.dot_dimension_numbers<[1], [1], [0], [0], [0, 0, 1, 0], [], []>} : vector<8x512xf32>, vector<256x512xf32>, vector<8x256xf32> -> vector<8x256xf32>
    %7 = arith.addf %3, %6 : vector<8x256xf32>
    %c0_6 = arith.constant 0 : index
    %c0_7 = arith.constant 0 : index
    %8 = vector.load %arg7[%c0_6, %c0_7] : memref<8x256xf32, #tpu.memory_space<vmem>>, vector<8x256xf32>
    tpu.vector_store %arg7[%c0_6, %c0_7], %7 {strides = array<i32>} : memref<8x256xf32, #tpu.memory_space<vmem>>, vector<8x256xf32>,
    %c0_i32_8 = arith.constant 0 : i32
    %9 = arith.cmpi eq, %arg2, %c0_i32_8 : i32
    %10 = arith.extui %9 : i1 to i32
    %c0_i32_9 = arith.constant 0 : i32
    %11 = arith.cmpi ne, %10, %c0_i32_9 : i32
    scf.if %11 {
      %c0_10 = arith.constant 0 : index
      %c0_11 = arith.constant 0 : index
      %12 = vector.load %arg7[%c0_10, %c0_11] : memref<8x256xf32, #tpu.memory_space<vmem>>, vector<8x256xf32>
      %c0_12 = arith.constant 0 : index
      %c0_13 = arith.constant 0 : index
      %13 = vector.load %arg5[%c0_12, %c0_13] : memref<1x256xf32, #tpu.memory_space<vmem>>, vector<1x256xf32>
      %14 = vector.broadcast %13 : vector<1x256xf32> to vector<8x256xf32>
      %15 = arith.addf %12, %14 : vector<8x256xf32>
      %c0_14 = arith.constant 0 : index
      %c0_15 = arith.constant 0 : index
      %16 = vector.load %arg6[%c0_14, %c0_15] : memref<8x256xf32, #tpu.memory_space<vmem>>, vector<8x256xf32>
      tpu.vector_store %arg6[%c0_14, %c0_15], %15 {strides = array<i32>} : memref<8x256xf32, #tpu.memory_space<vmem>>, vector<8x256xf32>,
    } else {
    }
    return
  }
  func.func @transform_0(%arg0: i32, %arg1: i32, %arg2: i32) -> (i32, i32) {
    %c0_i32 = arith.constant 0 : i32
    return %arg0, %arg2 : i32, i32
  }
  func.func @transform_1(%arg0: i32, %arg1: i32, %arg2: i32) -> (i32, i32) {
    %c0_i32 = arith.constant 0 : i32
    return %arg1, %arg2 : i32, i32
  }
  func.func @transform_2(%arg0: i32, %arg1: i32, %arg2: i32) -> (i32, i32) {
    %c0_i32 = arith.constant 0 : i32
    %c0_i32_0 = arith.constant 0 : i32
    return %c0_i32, %arg1 : i32, i32
  }
  func.func @transform_3(%arg0: i32, %arg1: i32, %arg2: i32) -> (i32, i32) {
    %c0_i32 = arith.constant 0 : i32
    return %arg0, %arg1 : i32, i32
  }
}

</mosaic_0001>

<llo_original>
// kernel: tpu_custom_call.1
$region0: #{tpu_custom_call.1}
  #allocation0 [shape = 'u32[]', space=smem, size = 0x4, offset = 0x4, fixed_abs, tag = 'smem constant byte address 0x4 - core index']
  #allocation1 [shape = 'u32[72,128]{1,0:T(1,128)}', space=vmem, size = 0x9000, scoped, tag = 'internal scratch']
  #allocation2 [shape = 'f32[8,256]{1,0:T(8,128)}', space=vmem, size = 0x2000, scoped, tag = 'scratch operand']
  %s0 = inlined_call_operand.hbm [shape: f32[8,512], index: 0, kind: input, shape index: {}]
  %s1 = inlined_call_operand.hbm [shape: f32[256,512], index: 1, kind: input, shape index: {}]
  %s2 = inlined_call_operand.hbm [shape: f32[1,256], index: 2, kind: input, shape index: {}]
  %s3 = inlined_call_operand.hbm [shape: f32[8,256], index: 3, kind: output, shape index: {}]
  %s4 = sld [smem:[#allocation0]]
  $region42: #{tpu_custom_call.1} parent=0
    _
  %s6 = ssub.s32 1, %s4
  %s7 = scalar_select 0, %s6, %s4
  $region1: #{tpu_custom_call.1} parent=0
    #allocation3 [shape = 'u8[16384]{0}', space=vmem, size = 0x4000, scoped, tag = 'input window, operand 0, single buffered']
    #allocation4 [shape = 's32[1]{0}', space=sflag, size = 0x4, scoped, tag = 'scoped memory for tpu_custom_call.1']
    #allocation5 [shape = 's32[1]{0}', space=sflag, size = 0x4, scoped, tag = 'scoped memory for tpu_custom_call.1']
    #allocation6 [shape = 'u8[524288]{0}', space=vmem, size = 0x80000, scoped, tag = 'input window, operand 1, single buffered']
    #allocation7 [shape = 's32[1]{0}', space=sflag, size = 0x4, scoped, tag = 'scoped memory for tpu_custom_call.1']
    #allocation8 [shape = 'u8[1024]{0}', space=vmem, size = 0x400, scoped, tag = 'input window, operand 2, single buffered']
    #allocation9 [shape = 'u8[8192]{0}', space=vmem, size = 0x2000, scoped, tag = 'output window, operand 0, single buffered']
    %8 = vsyncpa [#allocation4], 0
    %9 = vsyncpa [#allocation7], 0
    %10 = vsyncpa [#allocation5], 0
    // Predicated region
    $region2: #{tpu_custom_call.1} parent=1 // pred_check
      _
    $region3: #{tpu_custom_call.1} parent=1 // pred_check_branch
      %12 = sbr.rel (0) target = $region5
    $region4: #{tpu_custom_call.1} parent=1 // pred_region
      %14 = vsyncadd [#allocation4], 0
      %s16 = sshll.u32 %s0, 4
      %s17 = int_to_ptr.hbm [resolvable:$true] %s16
      %s18 = sshll.u32 [#allocation3], 4
      %s19 = int_to_ptr.vmem [resolvable:$true] %s18
      %21 = dma.hbm_to_vmem [thread:$0]  %s17, 512, %s19, [#allocation4]
    $region5: #{tpu_custom_call.1} parent=1 // pred_fallthru
      _
    // Predicated region
    $region6: #{tpu_custom_call.1} parent=1 // pred_check
      _
    $region7: #{tpu_custom_call.1} parent=1 // pred_check_branch
      %23 = sbr.rel (0) target = $region9
    $region8: #{tpu_custom_call.1} parent=1 // pred_region
      %25 = vsyncadd [#allocation7], 0
      %s26 = sshll.u32 %s1, 4
      %s27 = int_to_ptr.hbm [resolvable:$true] %s26
      %s28 = sshll.u32 [#allocation6], 4
      %s29 = int_to_ptr.vmem [resolvable:$true] %s28
      %34 = dma.hbm_to_vmem [thread:$0]  %s27, 16384, %s29, [#allocation7], 512, 512, 32
    $region9: #{tpu_custom_call.1} parent=1 // pred_fallthru
      _
    // Predicated region
    $region10: #{tpu_custom_call.1} parent=1 // pred_check
      _
    $region11: #{tpu_custom_call.1} parent=1 // pred_check_branch
      %36 = sbr.rel (0) target = $region13
    $region12: #{tpu_custom_call.1} parent=1 // pred_region
      %38 = vsyncadd [#allocation7], 0
      %s40 = sshll.u32 %s2, 4
      %s41 = int_to_ptr.hbm [resolvable:$true] %s40
      %s42 = sshll.u32 [#allocation8], 4
      %s43 = int_to_ptr.vmem [resolvable:$true] %s42
      %45 = dma.hbm_to_vmem [thread:$0]  %s41, 32, %s43, [#allocation7]
    $region13: #{tpu_custom_call.1} parent=1 // pred_fallthru
      _
    // Predicated region
    $region14: #{tpu_custom_call.1} parent=1 // pred_check
      _
    $region15: #{tpu_custom_call.1} parent=1 // pred_check_branch
      %47 = sbr.rel (0) target = $region17
    $region16: #{tpu_custom_call.1} parent=1 // pred_region
      %49 = dma.done [#allocation4], 512
    $region17: #{tpu_custom_call.1} parent=1 // pred_fallthru
      _
    // Predicated region
    $region18: #{tpu_custom_call.1} parent=1 // pred_check
      _
    $region19: #{tpu_custom_call.1} parent=1 // pred_check_branch
      %51 = sbr.rel (0) target = $region21
    $region20: #{tpu_custom_call.1} parent=1 // pred_region
      %53 = dma.done [#allocation7], 16384
    $region21: #{tpu_custom_call.1} parent=1 // pred_fallthru
      _
    // Predicated region
    $region22: #{tpu_custom_call.1} parent=1 // pred_check
      _
    $region23: #{tpu_custom_call.1} parent=1 // pred_check_branch
      %55 = sbr.rel (0) target = $region25
    $region24: #{tpu_custom_call.1} parent=1 // pred_region
      %57 = dma.done [#allocation7], 32
    $region25: #{tpu_custom_call.1} parent=1 // pred_fallthru
      _
    %p58 = scmp.eq.s32.totalorder 0, 0
    // Predicated region
    $region26: #{tpu_custom_call.1} parent=1 // pred_check
      %p59 = pneg %p58
    $region27: #{tpu_custom_call.1} parent=1 // pred_check_branch
      %61 = sbr.rel (%p59) target = $region29
    $region28: #{tpu_custom_call.1} parent=1 // pred_region
      %62 = vst [vmem:[#allocation2] sm:$0xff] 0.0
      %63 = vst [vmem:[#allocation2 + $0x8] sm:$0xff] 0.0
    $region29: #{tpu_custom_call.1} parent=1 // pred_fallthru
      _
    %v64 = vld [vmem:[#allocation2] sm:$0xff]
    %v65 = vld [vmem:[#allocation2 + $0x8] sm:$0xff]
    %v66 = vld [vmem:[#allocation3] sm:$0xff]
    %v67 = vld [vmem:[#allocation3 + $0x8] sm:$0xff]
    %v68 = vld [vmem:[#allocation3 + $0x10] sm:$0xff]
    %v69 = vld [vmem:[#allocation3 + $0x18] sm:$0xff]
    %v70 = vld [vmem:[#allocation6] sm:$0xff]
    %v71 = vld [vmem:[#allocation6 + $0x8] sm:$0xff]
    %v72 = vld [vmem:[#allocation6 + $0x10] sm:$0xff]
    %v73 = vld [vmem:[#allocation6 + $0x18] sm:$0xff]
    %v74 = vld [vmem:[#allocation6 + $0x20] sm:$0xff]
    %v75 = vld [vmem:[#allocation6 + $0x28] sm:$0xff]
    %v76 = vld [vmem:[#allocation6 + $0x30] sm:$0xff]
    %v77 = vld [vmem:[#allocation6 + $0x38] sm:$0xff]
    %v78 = vld [vmem:[#allocation6 + $0x40] sm:$0xff]
    %v79 = vld [vmem:[#allocation6 + $0x48] sm:$0xff]
    %v80 = vld [vmem:[#allocation6 + $0x50] sm:$0xff]
    %v81 = vld [vmem:[#allocation6 + $0x58] sm:$0xff]
    %v82 = vld [vmem:[#allocation6 + $0x60] sm:$0xff]
    %v83 = vld [vmem:[#allocation6 + $0x68] sm:$0xff]
    %v84 = vld [vmem:[#allocation6 + $0x70] sm:$0xff]
    %v85 = vld [vmem:[#allocation6 + $0x78] sm:$0xff]
    %v86 = vld [vmem:[#allocation6 + $0x80] sm:$0xff]
    %v87 = vld [vmem:[#allocation6 + $0x88] sm:$0xff]
    %v88 = vld [vmem:[#allocation6 + $0x90] sm:$0xff]
    %v89 = vld [vmem:[#allocation6 + $0x98] sm:$0xff]
    %v90 = vld [vmem:[#allocation6 + $0xa0] sm:$0xff]
    %v91 = vld [vmem:[#allocation6 + $0xa8] sm:$0xff]
    %v92 = vld [vmem:[#allocation6 + $0xb0] sm:$0xff]
    %v93 = vld [vmem:[#allocation6 + $0xb8] sm:$0xff]
    %v94 = vld [vmem:[#allocation6 + $0xc0] sm:$0xff]
    %v95 = vld [vmem:[#allocation6 + $0xc8] sm:$0xff]
    %v96 = vld [vmem:[#allocation6 + $0xd0] sm:$0xff]
    %v97 = vld [vmem:[#allocation6 + $0xd8] sm:$0xff]
    %v98 = vld [vmem:[#allocation6 + $0xe0] sm:$0xff]
    %v99 = vld [vmem:[#allocation6 + $0xe8] sm:$0xff]
    %v100 = vld [vmem:[#allocation6 + $0xf0] sm:$0xff]
    %v101 = vld [vmem:[#allocation6 + $0xf8] sm:$0xff]
    %v102 = vld [vmem:[#allocation6 + $0x100] sm:$0xff]
    %v103 = vld [vmem:[#allocation6 + $0x108] sm:$0xff]
    %v104 = vld [vmem:[#allocation6 + $0x110] sm:$0xff]
    %v105 = vld [vmem:[#allocation6 + $0x118] sm:$0xff]
    %v106 = vld [vmem:[#allocation6 + $0x120] sm:$0xff]
    %v107 = vld [vmem:[#allocation6 + $0x128] sm:$0xff]
    %v108 = vld [vmem:[#allocation6 + $0x130] sm:$0xff]
    %v109 = vld [vmem:[#allocation6 + $0x138] sm:$0xff]
    %v110 = vld [vmem:[#allocation6 + $0x140] sm:$0xff]
    %v111 = vld [vmem:[#allocation6 + $0x148] sm:$0xff]
    %v112 = vld [vmem:[#allocation6 + $0x150] sm:$0xff]
    %v113 = vld [vmem:[#allocation6 + $0x158] sm:$0xff]
    %v114 = vld [vmem:[#allocation6 + $0x160] sm:$0xff]
    %v115 = vld [vmem:[#allocation6 + $0x168] sm:$0xff]
    %v116 = vld [vmem:[#allocation6 + $0x170] sm:$0xff]
    %v117 = vld [vmem:[#allocation6 + $0x178] sm:$0xff]
    %v118 = vld [vmem:[#allocation6 + $0x180] sm:$0xff]
    %v119 = vld [vmem:[#allocation6 + $0x188] sm:$0xff]
    %v120 = vld [vmem:[#allocation6 + $0x190] sm:$0xff]
    %v121 = vld [vmem:[#allocation6 + $0x198] sm:$0xff]
    %v122 = vld [vmem:[#allocation6 + $0x1a0] sm:$0xff]
    %v123 = vld [vmem:[#allocation6 + $0x1a8] sm:$0xff]
    %v124 = vld [vmem:[#allocation6 + $0x1b0] sm:$0xff]
    %v125 = vld [vmem:[#allocation6 + $0x1b8] sm:$0xff]
    %v126 = vld [vmem:[#allocation6 + $0x1c0] sm:$0xff]
    %v127 = vld [vmem:[#allocation6 + $0x1c8] sm:$0xff]
    %v128 = vld [vmem:[#allocation6 + $0x1d0] sm:$0xff]
    %v129 = vld [vmem:[#allocation6 + $0x1d8] sm:$0xff]
    %v130 = vld [vmem:[#allocation6 + $0x1e0] sm:$0xff]
    %v131 = vld [vmem:[#allocation6 + $0x1e8] sm:$0xff]
    %v132 = vld [vmem:[#allocation6 + $0x1f0] sm:$0xff]
    %v133 = vld [vmem:[#allocation6 + $0x1f8] sm:$0xff]
    %v134 = vld [vmem:[#allocation6 + $0x200] sm:$0xff]
    %v135 = vld [vmem:[#allocation6 + $0x208] sm:$0xff]
    %v136 = vld [vmem:[#allocation6 + $0x210] sm:$0xff]
    %v137 = vld [vmem:[#allocation6 + $0x218] sm:$0xff]
    %v138 = vld [vmem:[#allocation6 + $0x220] sm:$0xff]
    %v139 = vld [vmem:[#allocation6 + $0x228] sm:$0xff]
    %v140 = vld [vmem:[#allocation6 + $0x230] sm:$0xff]
    %v141 = vld [vmem:[#allocation6 + $0x238] sm:$0xff]
    %v142 = vld [vmem:[#allocation6 + $0x240] sm:$0xff]
    %v143 = vld [vmem:[#allocation6 + $0x248] sm:$0xff]
    %v144 = vld [vmem:[#allocation6 + $0x250] sm:$0xff]
    %v145 = vld [vmem:[#allocation6 + $0x258] sm:$0xff]
    %v146 = vld [vmem:[#allocation6 + $0x260] sm:$0xff]
    %v147 = vld [vmem:[#allocation6 + $0x268] sm:$0xff]
    %v148 = vld [vmem:[#allocation6 + $0x270] sm:$0xff]
    %v149 = vld [vmem:[#allocation6 + $0x278] sm:$0xff]
    %v150 = vld [vmem:[#allocation6 + $0x280] sm:$0xff]
    %v151 = vld [vmem:[#allocation6 + $0x288] sm:$0xff]
    %v152 = vld [vmem:[#allocation6 + $0x290] sm:$0xff]
    %v153 = vld [vmem:[#allocation6 + $0x298] sm:$0xff]
    %v154 = vld [vmem:[#allocation6 + $0x2a0] sm:$0xff]
    %v155 = vld [vmem:[#allocation6 + $0x2a8] sm:$0xff]
    %v156 = vld [vmem:[#allocation6 + $0x2b0] sm:$0xff]
    %v157 = vld [vmem:[#allocation6 + $0x2b8] sm:$0xff]
    %v158 = vld [vmem:[#allocation6 + $0x2c0] sm:$0xff]
    %v159 = vld [vmem:[#allocation6 + $0x2c8] sm:$0xff]
    %v160 = vld [vmem:[#allocation6 + $0x2d0] sm:$0xff]
    %v161 = vld [vmem:[#allocation6 + $0x2d8] sm:$0xff]
    %v162 = vld [vmem:[#allocation6 + $0x2e0] sm:$0xff]
    %v163 = vld [vmem:[#allocation6 + $0x2e8] sm:$0xff]
    %v164 = vld [vmem:[#allocation6 + $0x2f0] sm:$0xff]
    %v165 = vld [vmem:[#allocation6 + $0x2f8] sm:$0xff]
    %v166 = vld [vmem:[#allocation6 + $0x300] sm:$0xff]
    %v167 = vld [vmem:[#allocation6 + $0x308] sm:$0xff]
    %v168 = vld [vmem:[#allocation6 + $0x310] sm:$0xff]
    %v169 = vld [vmem:[#allocation6 + $0x318] sm:$0xff]
    %v170 = vld [vmem:[#allocation6 + $0x320] sm:$0xff]
    %v171 = vld [vmem:[#allocation6 + $0x328] sm:$0xff]
    %v172 = vld [vmem:[#allocation6 + $0x330] sm:$0xff]
    %v173 = vld [vmem:[#allocation6 + $0x338] sm:$0xff]
    %v174 = vld [vmem:[#allocation6 + $0x340] sm:$0xff]
    %v175 = vld [vmem:[#allocation6 + $0x348] sm:$0xff]
    %v176 = vld [vmem:[#allocation6 + $0x350] sm:$0xff]
    %v177 = vld [vmem:[#allocation6 + $0x358] sm:$0xff]
    %v178 = vld [vmem:[#allocation6 + $0x360] sm:$0xff]
    %v179 = vld [vmem:[#allocation6 + $0x368] sm:$0xff]
    %v180 = vld [vmem:[#allocation6 + $0x370] sm:$0xff]
    %v181 = vld [vmem:[#allocation6 + $0x378] sm:$0xff]
    %v182 = vld [vmem:[#allocation6 + $0x380] sm:$0xff]
    %v183 = vld [vmem:[#allocation6 + $0x388] sm:$0xff]
    %v184 = vld [vmem:[#allocation6 + $0x390] sm:$0xff]
    %v185 = vld [vmem:[#allocation6 + $0x398] sm:$0xff]
    %v186 = vld [vmem:[#allocation6 + $0x3a0] sm:$0xff]
    %v187 = vld [vmem:[#allocation6 + $0x3a8] sm:$0xff]
    %v188 = vld [vmem:[#allocation6 + $0x3b0] sm:$0xff]
    %v189 = vld [vmem:[#allocation6 + $0x3b8] sm:$0xff]
    %v190 = vld [vmem:[#allocation6 + $0x3c0] sm:$0xff]
    %v191 = vld [vmem:[#allocation6 + $0x3c8] sm:$0xff]
    %v192 = vld [vmem:[#allocation6 + $0x3d0] sm:$0xff]
    %v193 = vld [vmem:[#allocation6 + $0x3d8] sm:$0xff]
    %v194 = vld [vmem:[#allocation6 + $0x3e0] sm:$0xff]
    %v195 = vld [vmem:[#allocation6 + $0x3e8] sm:$0xff]
    %v196 = vld [vmem:[#allocation6 + $0x3f0] sm:$0xff]
    %v197 = vld [vmem:[#allocation6 + $0x3f8] sm:$0xff]
    %198 = vmatpush.xpose.msra.mxu0 %v130
    %199 = vmatpush.xpose.msra.mxu0 %v126
    %200 = vmatpush.xpose.msra.mxu0 %v122
    %201 = vmatpush.xpose.msra.mxu0 %v118
    %202 = vmatpush.xpose.msra.mxu0 %v114
    %203 = vmatpush.xpose.msra.mxu0 %v110
    %204 = vmatpush.xpose.msra.mxu0 %v106
    %205 = vmatpush.xpose.msra.mxu0 %v102
    %206 = vmatpush.xpose.msra.mxu0 %v98
    %207 = vmatpush.xpose.msra.mxu0 %v94
    %208 = vmatpush.xpose.msra.mxu0 %v90
    %209 = vmatpush.xpose.msra.mxu0 %v86
    %210 = vmatpush.xpose.msra.mxu0 %v82
    %211 = vmatpush.xpose.msra.mxu0 %v78
    %212 = vmatpush.xpose.msra.mxu0 %v74
    %213 = vmatpush.xpose.msra.mxu0 %v70
    %214 = vmatmul.f32.gmra.mxu0 %v66
    %v215 = vpop.f32.mrf.mxu0
    %v216 = vadd.f32 0.0, %v215
    %217 = vdwg.mxu0
    %218 = vmatpush.xpose.msra.mxu0 %v131
    %219 = vmatpush.xpose.msra.mxu0 %v127
    %220 = vmatpush.xpose.msra.mxu0 %v123
    %221 = vmatpush.xpose.msra.mxu0 %v119
    %222 = vmatpush.xpose.msra.mxu0 %v115
    %223 = vmatpush.xpose.msra.mxu0 %v111
    %224 = vmatpush.xpose.msra.mxu0 %v107
    %225 = vmatpush.xpose.msra.mxu0 %v103
    %226 = vmatpush.xpose.msra.mxu0 %v99
    %227 = vmatpush.xpose.msra.mxu0 %v95
    %228 = vmatpush.xpose.msra.mxu0 %v91
    %229 = vmatpush.xpose.msra.mxu0 %v87
    %230 = vmatpush.xpose.msra.mxu0 %v83
    %231 = vmatpush.xpose.msra.mxu0 %v79
    %232 = vmatpush.xpose.msra.mxu0 %v75
    %233 = vmatpush.xpose.msra.mxu0 %v71
    %234 = vmatmul.f32.gmra.mxu0 %v67
    %v235 = vpop.f32.mrf.mxu0
    %v236 = vadd.f32 %v216, %v235
    %237 = vdwg.mxu0
    %238 = vmatpush.xpose.msra.mxu0 %v132
    %239 = vmatpush.xpose.msra.mxu0 %v128
    %240 = vmatpush.xpose.msra.mxu0 %v124
    %241 = vmatpush.xpose.msra.mxu0 %v120
    %242 = vmatpush.xpose.msra.mxu0 %v116
    %243 = vmatpush.xpose.msra.mxu0 %v112
    %244 = vmatpush.xpose.msra.mxu0 %v108
    %245 = vmatpush.xpose.msra.mxu0 %v104
    %246 = vmatpush.xpose.msra.mxu0 %v100
    %247 = vmatpush.xpose.msra.mxu0 %v96
    %248 = vmatpush.xpose.msra.mxu0 %v92
    %249 = vmatpush.xpose.msra.mxu0 %v88
    %250 = vmatpush.xpose.msra.mxu0 %v84
    %251 = vmatpush.xpose.msra.mxu0 %v80
    %252 = vmatpush.xpose.msra.mxu0 %v76
    %253 = vmatpush.xpose.msra.mxu0 %v72
    %254 = vmatmul.f32.gmra.mxu0 %v68
    %v255 = vpop.f32.mrf.mxu0
    %v256 = vadd.f32 %v236, %v255
    %257 = vdwg.mxu0
    %258 = vmatpush.xpose.msra.mxu0 %v133
    %259 = vmatpush.xpose.msra.mxu0 %v129
    %260 = vmatpush.xpose.msra.mxu0 %v125
    %261 = vmatpush.xpose.msra.mxu0 %v121
    %262 = vmatpush.xpose.msra.mxu0 %v117
    %263 = vmatpush.xpose.msra.mxu0 %v113
    %264 = vmatpush.xpose.msra.mxu0 %v109
    %265 = vmatpush.xpose.msra.mxu0 %v105
    %266 = vmatpush.xpose.msra.mxu0 %v101
    %267 = vmatpush.xpose.msra.mxu0 %v97
    %268 = vmatpush.xpose.msra.mxu0 %v93
    %269 = vmatpush.xpose.msra.mxu0 %v89
    %270 = vmatpush.xpose.msra.mxu0 %v85
    %271 = vmatpush.xpose.msra.mxu0 %v81
    %272 = vmatpush.xpose.msra.mxu0 %v77
    %273 = vmatpush.xpose.msra.mxu0 %v73
    %274 = vmatmul.f32.gmra.mxu0 %v69
    %v275 = vpop.f32.mrf.mxu0
    %v276 = vadd.f32 %v256, %v275
    %277 = vdwg.mxu0
    %278 = vmatpush.xpose.msra.mxu0 %v194
    %279 = vmatpush.xpose.msra.mxu0 %v190
    %280 = vmatpush.xpose.msra.mxu0 %v186
    %281 = vmatpush.xpose.msra.mxu0 %v182
    %282 = vmatpush.xpose.msra.mxu0 %v178
    %283 = vmatpush.xpose.msra.mxu0 %v174
    %284 = vmatpush.xpose.msra.mxu0 %v170
    %285 = vmatpush.xpose.msra.mxu0 %v166
    %286 = vmatpush.xpose.msra.mxu0 %v162
    %287 = vmatpush.xpose.msra.mxu0 %v158
    %288 = vmatpush.xpose.msra.mxu0 %v154
    %289 = vmatpush.xpose.msra.mxu0 %v150
    %290 = vmatpush.xpose.msra.mxu0 %v146
    %291 = vmatpush.xpose.msra.mxu0 %v142
    %292 = vmatpush.xpose.msra.mxu0 %v138
    %293 = vmatpush.xpose.msra.mxu0 %v134
    %294 = vmatmul.f32.gmra.mxu0 %v66
    %v295 = vpop.f32.mrf.mxu0
    %v296 = vadd.f32 0.0, %v295
    %297 = vdwg.mxu0
    %298 = vmatpush.xpose.msra.mxu0 %v195
    %299 = vmatpush.xpose.msra.mxu0 %v191
    %300 = vmatpush.xpose.msra.mxu0 %v187
    %301 = vmatpush.xpose.msra.mxu0 %v183
    %302 = vmatpush.xpose.msra.mxu0 %v179
    %303 = vmatpush.xpose.msra.mxu0 %v175
    %304 = vmatpush.xpose.msra.mxu0 %v171
    %305 = vmatpush.xpose.msra.mxu0 %v167
    %306 = vmatpush.xpose.msra.mxu0 %v163
    %307 = vmatpush.xpose.msra.mxu0 %v159
    %308 = vmatpush.xpose.msra.mxu0 %v155
    %309 = vmatpush.xpose.msra.mxu0 %v151
    %310 = vmatpush.xpose.msra.mxu0 %v147
    %311 = vmatpush.xpose.msra.mxu0 %v143
    %312 = vmatpush.xpose.msra.mxu0 %v139
    %313 = vmatpush.xpose.msra.mxu0 %v135
    %314 = vmatmul.f32.gmra.mxu0 %v67
    %v315 = vpop.f32.mrf.mxu0
    %v316 = vadd.f32 %v296, %v315
    %317 = vdwg.mxu0
    %318 = vmatpush.xpose.msra.mxu0 %v196
    %319 = vmatpush.xpose.msra.mxu0 %v192
    %320 = vmatpush.xpose.msra.mxu0 %v188
    %321 = vmatpush.xpose.msra.mxu0 %v184
    %322 = vmatpush.xpose.msra.mxu0 %v180
    %323 = vmatpush.xpose.msra.mxu0 %v176
    %324 = vmatpush.xpose.msra.mxu0 %v172
    %325 = vmatpush.xpose.msra.mxu0 %v168
    %326 = vmatpush.xpose.msra.mxu0 %v164
    %327 = vmatpush.xpose.msra.mxu0 %v160
    %328 = vmatpush.xpose.msra.mxu0 %v156
    %329 = vmatpush.xpose.msra.mxu0 %v152
    %330 = vmatpush.xpose.msra.mxu0 %v148
    %331 = vmatpush.xpose.msra.mxu0 %v144
    %332 = vmatpush.xpose.msra.mxu0 %v140
    %333 = vmatpush.xpose.msra.mxu0 %v136
    %334 = vmatmul.f32.gmra.mxu0 %v68
    %v335 = vpop.f32.mrf.mxu0
    %v336 = vadd.f32 %v316, %v335
    %337 = vdwg.mxu0
    %338 = vmatpush.xpose.msra.mxu0 %v197
    %339 = vmatpush.xpose.msra.mxu0 %v193
    %340 = vmatpush.xpose.msra.mxu0 %v189
    %341 = vmatpush.xpose.msra.mxu0 %v185
    %342 = vmatpush.xpose.msra.mxu0 %v181
    %343 = vmatpush.xpose.msra.mxu0 %v177
    %344 = vmatpush.xpose.msra.mxu0 %v173
    %345 = vmatpush.xpose.msra.mxu0 %v169
    %346 = vmatpush.xpose.msra.mxu0 %v165
    %347 = vmatpush.xpose.msra.mxu0 %v161
    %348 = vmatpush.xpose.msra.mxu0 %v157
    %349 = vmatpush.xpose.msra.mxu0 %v153
    %350 = vmatpush.xpose.msra.mxu0 %v149
    %351 = vmatpush.xpose.msra.mxu0 %v145
    %352 = vmatpush.xpose.msra.mxu0 %v141
    %353 = vmatpush.xpose.msra.mxu0 %v137
    %354 = vmatmul.f32.gmra.mxu0 %v69
    %v355 = vpop.f32.mrf.mxu0
    %v356 = vadd.f32 %v336, %v355
    %357 = vdwg.mxu0
    %v358 = vadd.f32 %v64, %v276
    %v359 = vadd.f32 %v65, %v356
    %360 = vst [vmem:[#allocation2] sm:$0xff] %v358
    %361 = vst [vmem:[#allocation2 + $0x8] sm:$0xff] %v359
    // Predicated region
    $region30: #{tpu_custom_call.1} parent=1 // pred_check
      %p362 = pneg %p58
    $region31: #{tpu_custom_call.1} parent=1 // pred_check_branch
      %364 = sbr.rel (%p362) target = $region33
    $region32: #{tpu_custom_call.1} parent=1 // pred_region
      %v365 = vld [vmem:[#allocation2] sm:$0xff]
      %v366 = vld [vmem:[#allocation2 + $0x8] sm:$0xff]
      %v367 = vld [vmem:[#allocation8] sm:$0x3]
      %v369 = vperm.slane %v367, 0
      %v370 = vperm.slane %v367, 1
      %v373 = vadd.f32 %v365, %v369
      %v374 = vadd.f32 %v366, %v370
      %375 = vst [vmem:[#allocation9] sm:$0xff] %v373
      %376 = vst [vmem:[#allocation9 + $0x8] sm:$0xff] %v374
    $region33: #{tpu_custom_call.1} parent=1 // pred_fallthru
      _
    // Predicated region
    $region34: #{tpu_custom_call.1} parent=1 // pred_check
      _
    $region35: #{tpu_custom_call.1} parent=1 // pred_check_branch
      %378 = sbr.rel (0) target = $region37
    $region36: #{tpu_custom_call.1} parent=1 // pred_region
      %380 = vsyncadd [#allocation5], 0
      %s382 = sshll.u32 [#allocation9], 4
      %s383 = int_to_ptr.vmem [resolvable:$true] %s382
      %s384 = sshll.u32 %s3, 4
      %s385 = int_to_ptr.hbm [resolvable:$true] %s384
      %387 = dma.vmem_to_hbm [thread:$0]  %s383, 256, %s385, [#allocation5]
    $region37: #{tpu_custom_call.1} parent=1 // pred_fallthru
      _
    // Predicated region
    $region38: #{tpu_custom_call.1} parent=1 // pred_check
      _
    $region39: #{tpu_custom_call.1} parent=1 // pred_check_branch
      %389 = sbr.rel (0) target = $region41
    $region40: #{tpu_custom_call.1} parent=1 // pred_region
      %391 = dma.done [#allocation5], 256
    $region41: #{tpu_custom_call.1} parent=1 // pred_fallthru
      _
    %392 = vsyncpa [#allocation4], 1
    %393 = vsyncpa [#allocation7], 1
    %394 = vsyncpa [#allocation5], 1

</llo_original>
